<compile_context>
chip_gen: v6e
topology: v6e:2x2x1
jax: 0.10.0
libtpu: 0.0.40
codegen_flags: <defaults>
</compile_context>

<pallas_src>
import jax
import jax.numpy as jnp
from jax.experimental import pallas as pl
from jax.experimental.pallas import tpu as pltpu


def _round_up(n, m):
    return -(-n // m) * m


def _ceil8(n):
    return _round_up(n, 8)


# ----------------------------------------------------------------------------
# Parameter init (mirrors nn.Linear default U[-1/sqrt(fan_in), +]), (in, out).
# ----------------------------------------------------------------------------
def init_q_critic_params(key, state_dim, action_dim, hid_shape):
    layers = [state_dim + action_dim] + list(hid_shape) + [1]

    def init_net(key):
        ps = []
        for j in range(len(layers) - 1):
            fan_in, fan_out = layers[j], layers[j + 1]
            key, kw, kb = jax.random.split(key, 3)
            bound = 1.0 / jnp.sqrt(jnp.float32(fan_in))
            w = jax.random.uniform(kw, (fan_in, fan_out), jnp.float32,
                                   minval=-bound, maxval=bound)
            b = jax.random.uniform(kb, (1, fan_out), jnp.float32,
                                   minval=-bound, maxval=bound)
            ps += [w, b]
        return key, tuple(ps)

    key, q1_params = init_net(key)
    key, q2_params = init_net(key)
    return q1_params + q2_params


# ----------------------------------------------------------------------------
# Fuse the twin heads into one MLP and pack everything into ONE f32 buffer
# whose width is a full 128-lane multiple.
# ----------------------------------------------------------------------------
def fuse_and_pack_params(params, state_dim, action_dim, hid_shape):
    n_layers = len(hid_shape) + 1
    per_head = 2 * n_layers
    head_a, head_b = params[:per_head], params[per_head:]
    wa, ba = head_a[0::2], head_a[1::2]
    wb, bb = head_b[0::2], head_b[1::2]

    # Layer 0: both heads read the same (state, action) input -> column concat.
    fused_ws = [jnp.concatenate([wa[0], wb[0]], axis=1)]           # (sd+ad, 2*H1)
    fused_bs = [jnp.concatenate([ba[0], bb[0]], axis=1)]           # (1, 2*H1)
    # Deeper layers: independent heads -> block-diagonal fused weights.
    for j in range(1, n_layers):
        ka, na = wa[j].shape
        kb, nb = wb[j].shape
        top = jnp.concatenate([wa[j], jnp.zeros((ka, nb), jnp.float32)], axis=1)
        bot = jnp.concatenate([jnp.zeros((kb, na), jnp.float32), wb[j]], axis=1)
        fused_ws.append(jnp.concatenate([top, bot], axis=0))        # (ka+kb, na+nb)
        fused_bs.append(jnp.concatenate([ba[j], bb[j]], axis=1))

    in_dim = state_dim + action_dim
    in_pad = _ceil8(in_dim)
    # Full-lane packed width: activations / weights / output all 128-wide.
    width = max(128, _round_up(max(w.shape[1] for w in fused_ws), 128))

    # (array, padded_row_count): layer-0 weight rows padded to the padded input
    # width (its matmul K); deeper weights padded to `width` rows so their K
    # equals the lane width of the activations (zero rows contribute nothing).
    blocks = [(fused_ws[0], in_pad), (fused_bs[0], 8)]
    for j in range(1, n_layers):
        blocks += [(fused_ws[j], width), (fused_bs[j], 8)]

    offsets, padded, row = [], [], 0
    for arr, row_pad in blocks:
        r, c = arr.shape
        offsets.append(row)
        padded.append(jnp.zeros((row_pad, width), jnp.float32).at[:r, :c].set(arr))
        row += row_pad
    packed = jnp.concatenate(padded, axis=0)                        # (rows, width)

    meta = {
        "width": int(width),
        "in_pad": int(in_pad),
        "n_layers": int(n_layers),
        "offsets": tuple(int(o) for o in offsets),
        "row_pads": tuple(int(rp) for _, rp in blocks),
        "shapes": tuple((int(a.shape[0]), int(a.shape[1])) for a, _ in blocks),
    }
    return packed, meta


# ----------------------------------------------------------------------------
# Kernel: fused 3-matmul MLP over one batch tile, params from the packed ref.
# All loads/stores are full-lane (128) wide; output is the full-width slab.
# ----------------------------------------------------------------------------
def _make_kernel(meta):
    offs = meta["offsets"]
    row_pads = meta["row_pads"]
    n_layers = meta["n_layers"]

    def kernel(sa_ref, p_ref, q_ref):
        # Layer 0: single matmul over the fused (state|action) input.
        o_w, o_b = offs[0], offs[1]
        w = p_ref[o_w:o_w + row_pads[0], :]
        b = p_ref[o_b:o_b + 1, :]
        h = jnp.dot(sa_ref[...], w, preferred_element_type=jnp.float32) + b
        h = jnp.maximum(h, 0.0)

        for j in range(1, n_layers):
            o_w, o_b = offs[2 * j], offs[2 * j + 1]
            w = p_ref[o_w:o_w + row_pads[2 * j], :]
            b = p_ref[o_b:o_b + 1, :]
            h = jnp.dot(h, w, preferred_element_type=jnp.float32) + b
            if j < n_layers - 1:
                h = jnp.maximum(h, 0.0)

        # Lane-dense, unmasked full-width store; only cols 0..1 carry q1/q2
        # (remaining columns are exact zeros from the zero-padded weights).
        q_ref[...] = h

    return kernel


_BATCH_TILE = 2048      # large-batch cap (amortizes ~0.35us/step on v5e/v6e)
_SMALL_BATCH = 256      # below this: one grid step, tile == batch


def _pick_batch_tile(b):
    if b <= _SMALL_BATCH:
        return b
    # Multiple of 128 (lane/MXU aligned), capped at _BATCH_TILE, and split so
    # the "parallel" batch axis has >= 2 steps (keeps both v7x TCs busy).
    return min(_BATCH_TILE, _round_up((b + 1) // 2, 128))


def make_q_critic_forward(meta, state_dim, action_dim):
    kernel = _make_kernel(meta)
    width = meta["width"]
    in_dim = state_dim + action_dim
    in_pad = meta["in_pad"]
    w_shapes = [meta["shapes"][2 * j] for j in range(meta["n_layers"])]
    flops_per_row = 2 * sum(k * n for k, n in w_shapes)

    def forward(state, action, packed):
        b = state.shape[0]
        # Single fused input block: one DMA per step, one 8-aligned-K matmul.
        sa = jnp.concatenate([state, action], axis=1)
        if in_pad != in_dim:
            sa = jnp.pad(sa, ((0, 0), (0, in_pad - in_dim)))

        tb = _pick_batch_tile(b)
        grid = (pl.cdiv(b, tb),)

        cost = pl.CostEstimate(
            flops=flops_per_row * b,
            transcendentals=0,
            bytes_accessed=(sa.size + packed.size + b * width) * 4,
        )

        out = pl.pallas_call(
            kernel,
            out_shape=jax.ShapeDtypeStruct((b, width), jnp.float32),
            grid=grid,
            in_specs=[
                pl.BlockSpec((tb, in_pad), lambda i: (i, 0)),
                # Single packed parameter buffer: one DMA, VMEM-resident
                # across all batch tiles (constant block index).
                pl.BlockSpec(packed.shape, lambda i: (0, 0)),
            ],
            out_specs=pl.BlockSpec((tb, width), lambda i: (i, 0)),
            compiler_params=pltpu.CompilerParams(
                dimension_semantics=("parallel",)),
            cost_estimate=cost,
        )(sa, packed)

        # Cheap wrapper-side split of the lane-dense slab.
        return out[:, 0:1], out[:, 1:2]

    # TODO(synk): optional bf16 input/weight copies (f32 accumulation) for very
    # large training batches; skipped here since small-batch inference is
    # fixed-overhead bound.
    return jax.jit(forward)


if __name__ == "__main__":
    batch = 8
    state_dim = 12
    action_dim = 4
    hid_shape = (32, 32)

    key = jax.random.PRNGKey(0)
    k_state, k_action, k_params = jax.random.split(key, 3)

    state = jax.random.normal(k_state, (batch, state_dim), jnp.float32)
    action = jax.random.normal(k_action, (batch, action_dim), jnp.float32)
    params = init_q_critic_params(k_params, state_dim, action_dim, hid_shape)

    packed, meta = fuse_and_pack_params(params, state_dim, action_dim, hid_shape)
    forward = make_q_critic_forward(meta, state_dim, action_dim)

    q1, q2 = forward(state, action, packed)
    jax.block_until_ready((q1, q2))

    # Plain-JAX reference on the ORIGINAL (unfused) twin-head parameters.
    def ref_forward(state, action, params):
        sa = jnp.concatenate([state, action], axis=1)
        (w1a, b1a, w2a, b2a, w3a, b3a,
         w1b, b1b, w2b, b2b, w3b, b3b) = params

        def mlp(x, w1, b1, w2, b2, w3, b3):
            h = jnp.maximum(x @ w1 + b1, 0.0)
            h = jnp.maximum(h @ w2 + b2, 0.0)
            return h @ w3 + b3

        return (mlp(sa, w1a, b1a, w2a, b2a, w3a, b3a),
                mlp(sa, w1b, b1b, w2b, b2b, w3b, b3b))

    r1, r2 = ref_forward(state, action, params)
    assert q1.shape == (batch, 1) and q2.shape == (batch, 1)
    assert jnp.allclose(q1, r1, atol=1e-5), float(jnp.max(jnp.abs(q1 - r1)))
    assert jnp.allclose(q2, r2, atol=1e-5), float(jnp.max(jnp.abs(q2 - r2)))

    print("KERNEL_OK")
</pallas_src>

<mosaic_0001>
module attributes {stable_mosaic.version = 11 : i64} {
  func.func @kernel(%arg0: i32, %arg1: memref<8x16xf32, #tpu.memory_space<vmem>>, %arg2: memref<296x128xf32, #tpu.memory_space<vmem>>, %arg3: memref<8x128xf32, #tpu.memory_space<vmem>>) attributes {dimension_semantics = [#tpu.dimension_semantics<parallel>], iteration_bounds = array<i64: 1>, scalar_prefetch = 0 : i64, scratch_operands = 0 : i64, tpu.core_type = #tpu.core_type<tc>, window_params = [{transform_indices = @transform_0, window_bounds = array<i64: 8, 16>}, {pipeline_mode = #tpu.pipeline_mode<synchronous>, transform_indices = @transform_1, window_bounds = array<i64: 296, 128>}, {transform_indices = @transform_2, window_bounds = array<i64: 8, 128>}]} {
    %c0 = arith.constant 0 : index
    %c0_0 = arith.constant 0 : index
    %0 = vector.load %arg2[%c0, %c0_0] : memref<296x128xf32, #tpu.memory_space<vmem>>, vector<16x128xf32>
    %c16 = arith.constant 16 : index
    %c0_1 = arith.constant 0 : index
    %1 = vector.load %arg2[%c16, %c0_1] : memref<296x128xf32, #tpu.memory_space<vmem>>, vector<1x128xf32>
    %c0_2 = arith.constant 0 : index
    %c0_3 = arith.constant 0 : index
    %2 = vector.load %arg1[%c0_2, %c0_3] : memref<8x16xf32, #tpu.memory_space<vmem>>, vector<8x16xf32>
    %cst = arith.constant dense<0.000000e+00> : vector<8x128xf32>
    %3 = tpu.matmul %2, %0, %cst {dimension_numbers = #tpu.dot_dimension_numbers<[1], [0], [0], [1], [0, 0, 1, 1], [], []>} : vector<8x16xf32>, vector<16x128xf32>, vector<8x128xf32> -> vector<8x128xf32>
    %4 = vector.broadcast %1 : vector<1x128xf32> to vector<8x128xf32>
    %5 = arith.addf %3, %4 : vector<8x128xf32>
    %cst_4 = arith.constant 0.000000e+00 : f32
    %6 = vector.broadcast %cst_4 : f32 to vector<8x128xf32>
    %7 = arith.maximumf %5, %6 : vector<8x128xf32>
    %c24 = arith.constant 24 : index
    %c0_5 = arith.constant 0 : index
    %8 = vector.load %arg2[%c24, %c0_5] : memref<296x128xf32, #tpu.memory_space<vmem>>, vector<128x128xf32>
    %c152 = arith.constant 152 : index
    %c0_6 = arith.constant 0 : index
    %9 = vector.load %arg2[%c152, %c0_6] : memref<296x128xf32, #tpu.memory_space<vmem>>, vector<1x128xf32>
    %cst_7 = arith.constant dense<0.000000e+00> : vector<8x128xf32>
    %10 = tpu.matmul %7, %8, %cst_7 {dimension_numbers = #tpu.dot_dimension_numbers<[1], [0], [0], [1], [0, 0, 1, 1], [], []>} : vector<8x128xf32>, vector<128x128xf32>, vector<8x128xf32> -> vector<8x128xf32>
    %11 = vector.broadcast %9 : vector<1x128xf32> to vector<8x128xf32>
    %12 = arith.addf %10, %11 : vector<8x128xf32>
    %cst_8 = arith.constant 0.000000e+00 : f32
    %13 = vector.broadcast %cst_8 : f32 to vector<8x128xf32>
    %14 = arith.maximumf %12, %13 : vector<8x128xf32>
    %c160 = arith.constant 160 : index
    %c0_9 = arith.constant 0 : index
    %15 = vector.load %arg2[%c160, %c0_9] : memref<296x128xf32, #tpu.memory_space<vmem>>, vector<128x128xf32>
    %c288 = arith.constant 288 : index
    %c0_10 = arith.constant 0 : index
    %16 = vector.load %arg2[%c288, %c0_10] : memref<296x128xf32, #tpu.memory_space<vmem>>, vector<1x128xf32>
    %cst_11 = arith.constant dense<0.000000e+00> : vector<8x128xf32>
    %17 = tpu.matmul %14, %15, %cst_11 {dimension_numbers = #tpu.dot_dimension_numbers<[1], [0], [0], [1], [0, 0, 1, 1], [], []>} : vector<8x128xf32>, vector<128x128xf32>, vector<8x128xf32> -> vector<8x128xf32>
    %18 = vector.broadcast %16 : vector<1x128xf32> to vector<8x128xf32>
    %19 = arith.addf %17, %18 : vector<8x128xf32>
    %c0_12 = arith.constant 0 : index
    %c0_13 = arith.constant 0 : index
    %20 = vector.load %arg3[%c0_12, %c0_13] : memref<8x128xf32, #tpu.memory_space<vmem>>, vector<8x128xf32>
    tpu.vector_store %arg3[%c0_12, %c0_13], %19 {strides = array<i32>} : memref<8x128xf32, #tpu.memory_space<vmem>>, vector<8x128xf32>,
    return
  }
  func.func @transform_0(%arg0: i32) -> (i32, i32) {
    %c0_i32 = arith.constant 0 : i32
    %c0_i32_0 = arith.constant 0 : i32
    return %arg0, %c0_i32 : i32, i32
  }
  func.func @transform_1(%arg0: i32) -> (i32, i32) {
    %c0_i32 = arith.constant 0 : i32
    %c0_i32_0 = arith.constant 0 : i32
    %c0_i32_1 = arith.constant 0 : i32
    return %c0_i32, %c0_i32_0 : i32, i32
  }
  func.func @transform_2(%arg0: i32) -> (i32, i32) {
    %c0_i32 = arith.constant 0 : i32
    %c0_i32_0 = arith.constant 0 : i32
    return %arg0, %c0_i32 : i32, i32
  }
}

</mosaic_0001>

<llo_original>
// kernel: forward.1
$region0: #{forward.1}
  #allocation0 [shape = 'u32[]', space=smem, size = 0x4, offset = 0x4, fixed_abs, tag = 'smem constant byte address 0x4 - core index']
  #allocation1 [shape = 'u32[144,128]{1,0:T(1,128)}', space=vmem, size = 0x12000, scoped, tag = 'internal scratch']
  %s0 = inlined_call_operand.vmem [shape: f32[8,16], index: 0, kind: input, shape index: {}]
  %s1 = inlined_call_operand.hbm [shape: f32[296,128], index: 1, kind: input, shape index: {}]
  %s2 = inlined_call_operand.vmem [shape: f32[8,128], index: 2, kind: output, shape index: {}]
  %s3 = sld [smem:[#allocation0]]
  $region22: #{forward.1} parent=0
    _
  %s5 = ssub.s32 1, %s3
  %s6 = scalar_select 0, %s5, %s3
  $region1: #{forward.1} parent=0
    #allocation2 [shape = 'u8[151552]{0}', space=vmem, size = 0x25000, scoped, tag = 'input window, operand 1, single buffered']
    #allocation3 [shape = 's32[1]{0}', space=sflag, size = 0x4, scoped, tag = 'scoped memory for forward.1']
    %7 = vsyncpa [#allocation3], 0
    // Predicated region
    $region2: #{forward.1} parent=1 // pred_check
      _
    $region3: #{forward.1} parent=1 // pred_check_branch
      %9 = sbr.rel (0) target = $region5
    $region4: #{forward.1} parent=1 // pred_region
      _
    $region5: #{forward.1} parent=1 // pred_fallthru
      _
    // Predicated region
    $region6: #{forward.1} parent=1 // pred_check
      _
    $region7: #{forward.1} parent=1 // pred_check_branch
      %11 = sbr.rel (0) target = $region9
    $region8: #{forward.1} parent=1 // pred_region
      %s13 = ssub.s32 4736, 4736
      %14 = vsyncadd [#allocation3], %s13
      %s15 = sshll.u32 [#allocation2], 4
      %s16 = int_to_ptr.vmem [resolvable:$true] %s15
      %21 = dma.hbm_to_vmem [thread:$0]  %s1, 4736, %s16, [#allocation3], 128, 128, 8
    $region9: #{forward.1} parent=1 // pred_fallthru
      _
    // Predicated region
    $region10: #{forward.1} parent=1 // pred_check
      _
    $region11: #{forward.1} parent=1 // pred_check_branch
      %23 = sbr.rel (0) target = $region13
    $region12: #{forward.1} parent=1 // pred_region
      %24 = dma.done [#allocation3], 4736
    $region13: #{forward.1} parent=1 // pred_fallthru
      _
    %v25 = vld [vmem:[#allocation2] sm:$0xff]
    %v26 = vld [vmem:[#allocation2 + $0x8] sm:$0xff]
    %v27 = vld [vmem:[#allocation2 + $0x10] sm:$0x1]
    %v28 = vld [vmem:[%s0] sm:$0xff]
    %v29 = vlaneseq
    %v30 = vshrl.u32 %v29, 7
    %v31 = vsub.s32 0, %v30
    %v32 = vrot.slane %v27, %v31
    %vm33 = vcmask 130048
    %v35 = vsel %vm33, %v28, 0
    %37 = vmatprep.subr.mxu0 0.0
    %38 = vmatpush1.msra.mxu0 0.0
    %39 = vmatprep.subr.mxu0 0.0
    %40 = vmatpush1.msra.mxu0 0.0
    %41 = vmatprep.subr.mxu0 0.0
    %42 = vmatpush1.msra.mxu0 0.0
    %43 = vmatprep.subr.mxu0 0.0
    %44 = vmatpush1.msra.mxu0 0.0
    %45 = vmatprep.subr.mxu0 0.0
    %46 = vmatpush1.msra.mxu0 0.0
    %47 = vmatprep.subr.mxu0 0.0
    %48 = vmatpush1.msra.mxu0 0.0
    %49 = vmatprep.subr.mxu0 0.0
    %50 = vmatpush1.msra.mxu0 0.0
    %51 = vmatprep.subr.mxu0 0.0
    %52 = vmatpush1.msra.mxu0 0.0
    %53 = vmatprep.subr.mxu0 0.0
    %54 = vmatpush1.msra.mxu0 0.0
    %55 = vmatprep.subr.mxu0 0.0
    %56 = vmatpush1.msra.mxu0 0.0
    %57 = vmatprep.subr.mxu0 0.0
    %58 = vmatpush1.msra.mxu0 0.0
    %59 = vmatprep.subr.mxu0 0.0
    %60 = vmatpush1.msra.mxu0 0.0
    %61 = vmatprep.subr.mxu0 0.0
    %62 = vmatpush1.msra.mxu0 0.0
    %63 = vmatprep.subr.mxu0 0.0
    %64 = vmatpush1.msra.mxu0 0.0
    %65 = vmatprep.subr.mxu0 0.0
    %66 = vmatpush1.msra.mxu0 %v26
    %67 = vmatprep.subr.mxu0 0.0
    %68 = vmatpush1.msra.mxu0 %v25
    %69 = vmatprep.subr.mxu0 0.0
    %70 = vmatpush2.msra.mxu0 0.0
    %71 = vmatprep.subr.mxu0 0.0
    %72 = vmatpush2.msra.mxu0 0.0
    %73 = vmatprep.subr.mxu0 0.0
    %74 = vmatpush2.msra.mxu0 0.0
    %75 = vmatprep.subr.mxu0 0.0
    %76 = vmatpush2.msra.mxu0 0.0
    %77 = vmatprep.subr.mxu0 0.0
    %78 = vmatpush2.msra.mxu0 0.0
    %79 = vmatprep.subr.mxu0 0.0
    %80 = vmatpush2.msra.mxu0 0.0
    %81 = vmatprep.subr.mxu0 0.0
    %82 = vmatpush2.msra.mxu0 0.0
    %83 = vmatprep.subr.mxu0 0.0
    %84 = vmatpush2.msra.mxu0 0.0
    %85 = vmatprep.subr.mxu0 0.0
    %86 = vmatpush2.msra.mxu0 0.0
    %87 = vmatprep.subr.mxu0 0.0
    %88 = vmatpush2.msra.mxu0 0.0
    %89 = vmatprep.subr.mxu0 0.0
    %90 = vmatpush2.msra.mxu0 0.0
    %91 = vmatprep.subr.mxu0 0.0
    %92 = vmatpush2.msra.mxu0 0.0
    %93 = vmatprep.subr.mxu0 0.0
    %94 = vmatpush2.msra.mxu0 0.0
    %95 = vmatprep.subr.mxu0 0.0
    %96 = vmatpush2.msra.mxu0 0.0
    %97 = vmatprep.subr.mxu0 0.0
    %98 = vmatpush2.msra.mxu0 0.0
    %99 = vmatprep.subr.mxu0 0.0
    %100 = vmatpush2.msra.mxu0 0.0
    %101 = vmatprep.mubr.f32.mxu0 0.0
    %102 = vmatmul.mubr.f32.gmra.mxu0 %v35
    %v103 = vpop.f32.mrf.mxu0
    %v104 = vadd.f32 %v32, %v103
    %v105 = vpop.f32.mrf.mxu0
    %106 = vdwg.mxu0
    %v107 = vmax.f32 %v104, 0.0
    %v108 = vld [vmem:[#allocation2 + $0x18] sm:$0xff]
    %v109 = vld [vmem:[#allocation2 + $0x20] sm:$0xff]
    %v110 = vld [vmem:[#allocation2 + $0x28] sm:$0xff]
    %v111 = vld [vmem:[#allocation2 + $0x30] sm:$0xff]
    %v112 = vld [vmem:[#allocation2 + $0x38] sm:$0xff]
    %v113 = vld [vmem:[#allocation2 + $0x40] sm:$0xff]
    %v114 = vld [vmem:[#allocation2 + $0x48] sm:$0xff]
    %v115 = vld [vmem:[#allocation2 + $0x50] sm:$0xff]
    %v116 = vld [vmem:[#allocation2 + $0x58] sm:$0xff]
    %v117 = vld [vmem:[#allocation2 + $0x60] sm:$0xff]
    %v118 = vld [vmem:[#allocation2 + $0x68] sm:$0xff]
    %v119 = vld [vmem:[#allocation2 + $0x70] sm:$0xff]
    %v120 = vld [vmem:[#allocation2 + $0x78] sm:$0xff]
    %v121 = vld [vmem:[#allocation2 + $0x80] sm:$0xff]
    %v122 = vld [vmem:[#allocation2 + $0x88] sm:$0xff]
    %v123 = vld [vmem:[#allocation2 + $0x90] sm:$0xff]
    %v124 = vld [vmem:[#allocation2 + $0x98] sm:$0x1]
    %v125 = vlaneseq
    %v126 = vshrl.u32 %v125, 7
    %v127 = vsub.s32 0, %v126
    %v128 = vrot.slane %v124, %v127
    %129 = vmatprep.subr.mxu0 0.0
    %130 = vmatpush1.msra.mxu0 %v123
    %131 = vmatprep.subr.mxu0 0.0
    %132 = vmatpush1.msra.mxu0 %v122
    %133 = vmatprep.subr.mxu0 0.0
    %134 = vmatpush1.msra.mxu0 %v121
    %135 = vmatprep.subr.mxu0 0.0
    %136 = vmatpush1.msra.mxu0 %v120
    %137 = vmatprep.subr.mxu0 0.0
    %138 = vmatpush1.msra.mxu0 %v119
    %139 = vmatprep.subr.mxu0 0.0
    %140 = vmatpush1.msra.mxu0 %v118
    %141 = vmatprep.subr.mxu0 0.0
    %142 = vmatpush1.msra.mxu0 %v117
    %143 = vmatprep.subr.mxu0 0.0
    %144 = vmatpush1.msra.mxu0 %v116
    %145 = vmatprep.subr.mxu0 0.0
    %146 = vmatpush1.msra.mxu0 %v115
    %147 = vmatprep.subr.mxu0 0.0
    %148 = vmatpush1.msra.mxu0 %v114
    %149 = vmatprep.subr.mxu0 0.0
    %150 = vmatpush1.msra.mxu0 %v113
    %151 = vmatprep.subr.mxu0 0.0
    %152 = vmatpush1.msra.mxu0 %v112
    %153 = vmatprep.subr.mxu0 0.0
    %154 = vmatpush1.msra.mxu0 %v111
    %155 = vmatprep.subr.mxu0 0.0
    %156 = vmatpush1.msra.mxu0 %v110
    %157 = vmatprep.subr.mxu0 0.0
    %158 = vmatpush1.msra.mxu0 %v109
    %159 = vmatprep.subr.mxu0 0.0
    %160 = vmatpush1.msra.mxu0 %v108
    %161 = vmatprep.subr.mxu0 0.0
    %162 = vmatpush2.msra.mxu0 0.0
    %163 = vmatprep.subr.mxu0 0.0
    %164 = vmatpush2.msra.mxu0 0.0
    %165 = vmatprep.subr.mxu0 0.0
    %166 = vmatpush2.msra.mxu0 0.0
    %167 = vmatprep.subr.mxu0 0.0
    %168 = vmatpush2.msra.mxu0 0.0
    %169 = vmatprep.subr.mxu0 0.0
    %170 = vmatpush2.msra.mxu0 0.0
    %171 = vmatprep.subr.mxu0 0.0
    %172 = vmatpush2.msra.mxu0 0.0
    %173 = vmatprep.subr.mxu0 0.0
    %174 = vmatpush2.msra.mxu0 0.0
    %175 = vmatprep.subr.mxu0 0.0
    %176 = vmatpush2.msra.mxu0 0.0
    %177 = vmatprep.subr.mxu0 0.0
    %178 = vmatpush2.msra.mxu0 0.0
    %179 = vmatprep.subr.mxu0 0.0
    %180 = vmatpush2.msra.mxu0 0.0
    %181 = vmatprep.subr.mxu0 0.0
    %182 = vmatpush2.msra.mxu0 0.0
    %183 = vmatprep.subr.mxu0 0.0
    %184 = vmatpush2.msra.mxu0 0.0
    %185 = vmatprep.subr.mxu0 0.0
    %186 = vmatpush2.msra.mxu0 0.0
    %187 = vmatprep.subr.mxu0 0.0
    %188 = vmatpush2.msra.mxu0 0.0
    %189 = vmatprep.subr.mxu0 0.0
    %190 = vmatpush2.msra.mxu0 0.0
    %191 = vmatprep.subr.mxu0 0.0
    %192 = vmatpush2.msra.mxu0 0.0
    %193 = vmatprep.mubr.f32.mxu0 0.0
    %194 = vmatmul.mubr.f32.gmra.mxu0 %v107
    %v195 = vpop.f32.mrf.mxu0
    %v196 = vadd.f32 %v128, %v195
    %v197 = vpop.f32.mrf.mxu0
    %198 = vdwg.mxu0
    %v199 = vmax.f32 %v196, 0.0
    %v200 = vld [vmem:[#allocation2 + $0xa0] sm:$0xff]
    %v201 = vld [vmem:[#allocation2 + $0xa8] sm:$0xff]
    %v202 = vld [vmem:[#allocation2 + $0xb0] sm:$0xff]
    %v203 = vld [vmem:[#allocation2 + $0xb8] sm:$0xff]
    %v204 = vld [vmem:[#allocation2 + $0xc0] sm:$0xff]
    %v205 = vld [vmem:[#allocation2 + $0xc8] sm:$0xff]
    %v206 = vld [vmem:[#allocation2 + $0xd0] sm:$0xff]
    %v207 = vld [vmem:[#allocation2 + $0xd8] sm:$0xff]
    %v208 = vld [vmem:[#allocation2 + $0xe0] sm:$0xff]
    %v209 = vld [vmem:[#allocation2 + $0xe8] sm:$0xff]
    %v210 = vld [vmem:[#allocation2 + $0xf0] sm:$0xff]
    %v211 = vld [vmem:[#allocation2 + $0xf8] sm:$0xff]
    %v212 = vld [vmem:[#allocation2 + $0x100] sm:$0xff]
    %v213 = vld [vmem:[#allocation2 + $0x108] sm:$0xff]
    %v214 = vld [vmem:[#allocation2 + $0x110] sm:$0xff]
    %v215 = vld [vmem:[#allocation2 + $0x118] sm:$0xff]
    %v216 = vld [vmem:[#allocation2 + $0x120] sm:$0x1]
    %v217 = vlaneseq
    %v218 = vshrl.u32 %v217, 7
    %v219 = vsub.s32 0, %v218
    %v220 = vrot.slane %v216, %v219
    %221 = vmatprep.subr.mxu0 0.0
    %222 = vmatpush1.msra.mxu0 %v215
    %223 = vmatprep.subr.mxu0 0.0
    %224 = vmatpush1.msra.mxu0 %v214
    %225 = vmatprep.subr.mxu0 0.0
    %226 = vmatpush1.msra.mxu0 %v213
    %227 = vmatprep.subr.mxu0 0.0
    %228 = vmatpush1.msra.mxu0 %v212
    %229 = vmatprep.subr.mxu0 0.0
    %230 = vmatpush1.msra.mxu0 %v211
    %231 = vmatprep.subr.mxu0 0.0
    %232 = vmatpush1.msra.mxu0 %v210
    %233 = vmatprep.subr.mxu0 0.0
    %234 = vmatpush1.msra.mxu0 %v209
    %235 = vmatprep.subr.mxu0 0.0
    %236 = vmatpush1.msra.mxu0 %v208
    %237 = vmatprep.subr.mxu0 0.0
    %238 = vmatpush1.msra.mxu0 %v207
    %239 = vmatprep.subr.mxu0 0.0
    %240 = vmatpush1.msra.mxu0 %v206
    %241 = vmatprep.subr.mxu0 0.0
    %242 = vmatpush1.msra.mxu0 %v205
    %243 = vmatprep.subr.mxu0 0.0
    %244 = vmatpush1.msra.mxu0 %v204
    %245 = vmatprep.subr.mxu0 0.0
    %246 = vmatpush1.msra.mxu0 %v203
    %247 = vmatprep.subr.mxu0 0.0
    %248 = vmatpush1.msra.mxu0 %v202
    %249 = vmatprep.subr.mxu0 0.0
    %250 = vmatpush1.msra.mxu0 %v201
    %251 = vmatprep.subr.mxu0 0.0
    %252 = vmatpush1.msra.mxu0 %v200
    %253 = vmatprep.subr.mxu0 0.0
    %254 = vmatpush2.msra.mxu0 0.0
    %255 = vmatprep.subr.mxu0 0.0
    %256 = vmatpush2.msra.mxu0 0.0
    %257 = vmatprep.subr.mxu0 0.0
    %258 = vmatpush2.msra.mxu0 0.0
    %259 = vmatprep.subr.mxu0 0.0
    %260 = vmatpush2.msra.mxu0 0.0
    %261 = vmatprep.subr.mxu0 0.0
    %262 = vmatpush2.msra.mxu0 0.0
    %263 = vmatprep.subr.mxu0 0.0
    %264 = vmatpush2.msra.mxu0 0.0
    %265 = vmatprep.subr.mxu0 0.0
    %266 = vmatpush2.msra.mxu0 0.0
    %267 = vmatprep.subr.mxu0 0.0
    %268 = vmatpush2.msra.mxu0 0.0
    %269 = vmatprep.subr.mxu0 0.0
    %270 = vmatpush2.msra.mxu0 0.0
    %271 = vmatprep.subr.mxu0 0.0
    %272 = vmatpush2.msra.mxu0 0.0
    %273 = vmatprep.subr.mxu0 0.0
    %274 = vmatpush2.msra.mxu0 0.0
    %275 = vmatprep.subr.mxu0 0.0
    %276 = vmatpush2.msra.mxu0 0.0
    %277 = vmatprep.subr.mxu0 0.0
    %278 = vmatpush2.msra.mxu0 0.0
    %279 = vmatprep.subr.mxu0 0.0
    %280 = vmatpush2.msra.mxu0 0.0
    %281 = vmatprep.subr.mxu0 0.0
    %282 = vmatpush2.msra.mxu0 0.0
    %283 = vmatprep.subr.mxu0 0.0
    %284 = vmatpush2.msra.mxu0 0.0
    %285 = vmatprep.mubr.f32.mxu0 0.0
    %286 = vmatmul.mubr.f32.gmra.mxu0 %v199
    %v287 = vpop.f32.mrf.mxu0
    %v288 = vadd.f32 %v220, %v287
    %v289 = vpop.f32.mrf.mxu0
    %290 = vdwg.mxu0
    %291 = vst [vmem:[%s2] sm:$0xff] %v288
    // Predicated region
    $region14: #{forward.1} parent=1 // pred_check
      _
    $region15: #{forward.1} parent=1 // pred_check_branch
      %293 = sbr.rel (0) target = $region17
    $region16: #{forward.1} parent=1 // pred_region
      _
    $region17: #{forward.1} parent=1 // pred_fallthru
      _
    // Predicated region
    $region18: #{forward.1} parent=1 // pred_check
      _
    $region19: #{forward.1} parent=1 // pred_check_branch
      %295 = sbr.rel (0) target = $region21
    $region20: #{forward.1} parent=1 // pred_region
      _
    $region21: #{forward.1} parent=1 // pred_fallthru
      _
    %296 = vsyncpa [#allocation3], 1

</llo_original>
